<compile_context>
chip_gen: v7x
topology: tpu7x:2x2x1
jax: 0.10.0
libtpu: 0.0.40
codegen_flags: <defaults>
</compile_context>

<pallas_src>
import functools

import jax
import jax.numpy as jnp
from jax.experimental import pallas as pl
from jax.experimental.pallas import tpu as pltpu

_LANE = 128
_ROW_ALIGN = 16                          # bf16 sublane packing
_TILE_VMEM_BUDGET = 40 * 1024 * 1024     # conservative tile budget (fits v7x 64 MiB/TC)
_VMEM_LIMIT_BYTES = 56 * 1024 * 1024     # raised scoped VMEM limit, < v7x physical VMEM
_MAX_BATCH_TILE = 2048
_MAX_CLASS_TILE = 2048


def _round_up(x, m):
    return ((x + m - 1) // m) * m


def _pick_tiles(batch, d_pad, c_pad128):
    """Pick (tb, tc): batch tile (multiple of 16) and class tile (multiple of 128)."""
    tc = c_pad128 if c_pad128 <= _MAX_CLASS_TILE else 1024
    # Conservative per-step VMEM accounting (everything counted double-buffered).
    resident = 2 * (d_pad * tc * 2) + 2 * (tc * 4)        # bf16 weight + f32 bias
    per_row = 2 * (d_pad * 2) + 2 * (tc * 4)              # bf16 x row + f32 out row
    avail = _TILE_VMEM_BUDGET - resident
    if avail < per_row * _ROW_ALIGN:
        # TODO(synk): for very large input_dim add a trailing "arbitrary" K grid axis
        # with an f32 VMEM accumulator (pl.when init/finalize) instead of one big block.
        raise ValueError("input_dim too large for a single resident weight block")
    tb = (avail // per_row) // _ROW_ALIGN * _ROW_ALIGN
    tb = min(tb, _MAX_BATCH_TILE)
    if batch > 2 * _ROW_ALIGN:
        # At least 2 batch steps so the parallel axis can shard across cores (v7x megacore).
        tb = min(tb, _round_up(pl.cdiv(batch, 2), _ROW_ALIGN))
    tb = max(_ROW_ALIGN, min(tb, _round_up(batch, _ROW_ALIGN)))
    return tb, tc


def _pad_inputs(x, w, b):
    """Cast to bf16 / f32 and zero-pad to lane/sublane-aligned, tile-divisible shapes."""
    B, D = x.shape
    C = w.shape[1]
    d_pad = _round_up(D, _LANE)
    c_pad128 = _round_up(C, _LANE)
    tb, tc = _pick_tiles(B, d_pad, c_pad128)
    c_pad = _round_up(C, tc)
    b_pad = _round_up(B, tb)
    xp = jnp.pad(x.astype(jnp.bfloat16), ((0, b_pad - B), (0, d_pad - D)))
    wp = jnp.pad(w.astype(jnp.bfloat16), ((0, d_pad - D), (0, c_pad - C)))
    bp = jnp.pad(b.astype(jnp.float32), (0, c_pad - C)).reshape(1, c_pad)
    return xp, wp, bp, tb, tc, b_pad, c_pad


def _fc_kernel(x_ref, w_ref, b_ref, o_ref):
    # x_ref: (tb, Dp) bf16, w_ref: (Dp, tc) bf16, b_ref: (1, tc) f32, o_ref: (tb, tc) f32
    acc = jnp.dot(x_ref[...], w_ref[...], preferred_element_type=jnp.float32)
    o_ref[...] = acc + b_ref[...]


def _fc_argmax_kernel(x_ref, w_ref, b_ref, o_ref, *, num_classes):
    # Fused fc + argmax: never writes full logits to HBM.
    acc = jnp.dot(x_ref[...], w_ref[...], preferred_element_type=jnp.float32)
    logits = acc + b_ref[...]
    col = jax.lax.broadcasted_iota(jnp.int32, logits.shape, 1)
    logits = jnp.where(col < num_classes, logits, jnp.float32(-jnp.inf))
    row_max = jnp.max(logits, axis=-1, keepdims=True)
    # First index attaining the max (same tie-breaking as torch/jnp argmax).
    col_f = col.astype(jnp.float32)
    idx = jnp.where(logits == row_max, col_f, jnp.float32(logits.shape[-1]))
    o_ref[...] = jnp.min(idx, axis=-1, keepdims=True).astype(jnp.int32)


@jax.jit
def linear_probe_forward(x, w, b):
    """logits = x @ w + b.  x: (B, D) encoder features, w: (D, C), b: (C,) -> (B, C) f32."""
    B, D = x.shape
    C = w.shape[1]
    xp, wp, bp, tb, tc, b_pad, c_pad = _pad_inputs(x, w, b)
    d_pad = xp.shape[1]
    grid = (b_pad // tb, c_pad // tc)
    out = pl.pallas_call(
        _fc_kernel,
        out_shape=jax.ShapeDtypeStruct((b_pad, c_pad), jnp.float32),
        grid_spec=pltpu.PrefetchScalarGridSpec(
            num_scalar_prefetch=0,
            grid=grid,
            in_specs=[
                pl.BlockSpec((tb, d_pad), lambda i, j: (i, 0)),   # batch tile of features
                pl.BlockSpec((d_pad, tc), lambda i, j: (0, j)),   # resident weight tile
                pl.BlockSpec((1, tc), lambda i, j: (0, j)),       # bias tile
            ],
            out_specs=pl.BlockSpec((tb, tc), lambda i, j: (i, j)),
        ),
        compiler_params=pltpu.CompilerParams(
            dimension_semantics=("parallel", "parallel"),
            vmem_limit_bytes=_VMEM_LIMIT_BYTES,
        ),
    )(xp, wp, bp)
    return out[:B, :C]


@jax.jit
def linear_probe_predict(x, w, b):
    """Mirrors LinearProbe.predict: argmax over the class dim, fused into the kernel."""
    B, D = x.shape
    C = w.shape[1]
    xp, wp, bp, tb, tc, b_pad, c_pad = _pad_inputs(x, w, b)
    d_pad = xp.shape[1]
    if c_pad != tc:
        # Class dim tiled across grid steps -> argmax needs a cross-tile reduction;
        # fall back to logits + argmax outside the kernel.
        return jnp.argmax(linear_probe_forward(x, w, b), axis=1)
    grid = (b_pad // tb,)
    preds = pl.pallas_call(
        functools.partial(_fc_argmax_kernel, num_classes=C),
        out_shape=jax.ShapeDtypeStruct((b_pad, 1), jnp.int32),
        grid_spec=pltpu.PrefetchScalarGridSpec(
            num_scalar_prefetch=0,
            grid=grid,
            in_specs=[
                pl.BlockSpec((tb, d_pad), lambda i: (i, 0)),
                pl.BlockSpec((d_pad, c_pad), lambda i: (0, 0)),
                pl.BlockSpec((1, c_pad), lambda i: (0, 0)),
            ],
            out_specs=pl.BlockSpec((tb, 1), lambda i: (i, 0)),
        ),
        compiler_params=pltpu.CompilerParams(
            dimension_semantics=("parallel",),
            vmem_limit_bytes=_VMEM_LIMIT_BYTES,
        ),
    )(xp, wp, bp)
    return preds[:B, 0]


def init_fc_params(key, input_dim, num_classes):
    """Deterministic nn.Linear-style init: U(-1/sqrt(in), 1/sqrt(in))."""
    kw, kb = jax.random.split(key)
    bound = 1.0 / jnp.sqrt(jnp.float32(input_dim))
    # Stored as (input_dim, num_classes) == torch fc.weight (num_classes, input_dim).T
    w = jax.random.uniform(kw, (input_dim, num_classes), jnp.float32, -bound, bound)
    b = jax.random.uniform(kb, (num_classes,), jnp.float32, -bound, bound)
    return w, b


if __name__ == "__main__":
    key = jax.random.PRNGKey(0)
    k_feat, k_param = jax.random.split(key)

    batch = 8
    input_dim = 32      # encoder feature dim
    num_classes = 10

    # Stand-in for self.encoder(x): frozen external module, features consumed directly.
    # TODO(synk): the encoder is an arbitrary external frozen nn.Module with no defined
    # architecture here; only the fc probe head is implemented as a Pallas kernel.
    feats = jax.random.normal(k_feat, (batch, input_dim), jnp.float32)
    w, b = init_fc_params(k_param, input_dim, num_classes)

    logits = jax.block_until_ready(linear_probe_forward(feats, w, b))
    preds = jax.block_until_ready(linear_probe_predict(feats, w, b))

    # Reference with the same bf16-input / f32-accumulation numerics as the kernel.
    ref = jnp.dot(feats.astype(jnp.bfloat16), w.astype(jnp.bfloat16),
                  preferred_element_type=jnp.float32) + b
    assert logits.shape == (batch, num_classes)
    assert preds.shape == (batch,)
    assert jnp.allclose(logits, ref, atol=1e-4, rtol=1e-4)
    assert jnp.array_equal(preds, jnp.argmax(logits, axis=1))

    print("KERNEL_OK")
</pallas_src>

<mosaic_0001>
module attributes {stable_mosaic.version = 11 : i64} {
  func.func @_fc_kernel(%arg0: i32, %arg1: i32, %arg2: memref<16x128xbf16, #tpu.memory_space<vmem>>, %arg3: memref<128x128xbf16, #tpu.memory_space<vmem>>, %arg4: memref<1x128xf32, #tpu.memory_space<vmem>>, %arg5: memref<16x128xf32, #tpu.memory_space<vmem>>) attributes {dimension_semantics = [#tpu.dimension_semantics<parallel>, #tpu.dimension_semantics<parallel>], iteration_bounds = array<i64: 1, 1>, scalar_prefetch = 0 : i64, scratch_operands = 0 : i64, tpu.core_type = #tpu.core_type<tc>, window_params = [{transform_indices = @transform_0, window_bounds = array<i64: 16, 128>}, {transform_indices = @transform_1, window_bounds = array<i64: 128, 128>}, {transform_indices = @transform_2, window_bounds = array<i64: 1, 128>}, {transform_indices = @transform_3, window_bounds = array<i64: 16, 128>}]} {
    %c0 = arith.constant 0 : index
    %c0_0 = arith.constant 0 : index
    %0 = vector.load %arg2[%c0, %c0_0] : memref<16x128xbf16, #tpu.memory_space<vmem>>, vector<16x128xbf16>
    %c0_1 = arith.constant 0 : index
    %c0_2 = arith.constant 0 : index
    %1 = vector.load %arg3[%c0_1, %c0_2] : memref<128x128xbf16, #tpu.memory_space<vmem>>, vector<128x128xbf16>
    %cst = arith.constant dense<0.000000e+00> : vector<16x128xf32>
    %2 = tpu.matmul %0, %1, %cst {dimension_numbers = #tpu.dot_dimension_numbers<[1], [0], [0], [1], [0, 0, 1, 1], [], []>} : vector<16x128xbf16>, vector<128x128xbf16>, vector<16x128xf32> -> vector<16x128xf32>
    %c0_3 = arith.constant 0 : index
    %c0_4 = arith.constant 0 : index
    %3 = vector.load %arg4[%c0_3, %c0_4] : memref<1x128xf32, #tpu.memory_space<vmem>>, vector<1x128xf32>
    %4 = vector.broadcast %3 : vector<1x128xf32> to vector<16x128xf32>
    %5 = arith.addf %2, %4 : vector<16x128xf32>
    %c0_5 = arith.constant 0 : index
    %c0_6 = arith.constant 0 : index
    %6 = vector.load %arg5[%c0_5, %c0_6] : memref<16x128xf32, #tpu.memory_space<vmem>>, vector<16x128xf32>
    tpu.vector_store %arg5[%c0_5, %c0_6], %5 {strides = array<i32>} : memref<16x128xf32, #tpu.memory_space<vmem>>, vector<16x128xf32>,
    return
  }
  func.func @transform_0(%arg0: i32, %arg1: i32) -> (i32, i32) {
    %c0_i32 = arith.constant 0 : i32
    %c0_i32_0 = arith.constant 0 : i32
    return %arg0, %c0_i32 : i32, i32
  }
  func.func @transform_1(%arg0: i32, %arg1: i32) -> (i32, i32) {
    %c0_i32 = arith.constant 0 : i32
    %c0_i32_0 = arith.constant 0 : i32
    return %c0_i32, %arg1 : i32, i32
  }
  func.func @transform_2(%arg0: i32, %arg1: i32) -> (i32, i32) {
    %c0_i32 = arith.constant 0 : i32
    %c0_i32_0 = arith.constant 0 : i32
    return %c0_i32, %arg1 : i32, i32
  }
  func.func @transform_3(%arg0: i32, %arg1: i32) -> (i32, i32) {
    %c0_i32 = arith.constant 0 : i32
    return %arg0, %arg1 : i32, i32
  }
}

</mosaic_0001>

<llo_original>
// kernel: linear_probe_forward.1
$region0: #{linear_probe_forward.1}
  #allocation0 [shape = 'u32[]', space=smem, size = 0x4, offset = 0x4, fixed_abs, tag = 'smem constant byte address 0x4 - core index']
  #allocation1 [shape = 'u32[144,128]{1,0:T(1,128)}', space=vmem, size = 0x12000, scoped, tag = 'internal scratch']
  %s0 = inlined_call_operand.vmem [shape: bf16[16,128], index: 0, kind: input, shape index: {}]
  %s1 = inlined_call_operand.vmem [shape: bf16[128,128], index: 1, kind: input, shape index: {}]
  %s2 = inlined_call_operand.vmem [shape: f32[1,128], index: 2, kind: input, shape index: {}]
  %s3 = inlined_call_operand.vmem [shape: f32[16,128], index: 3, kind: output, shape index: {}]
  %s4 = sld [smem:[#allocation0]]
  $region22: #{linear_probe_forward.1} parent=0
    _
  %s6 = ssub.s32 1, %s4
  %s7 = scalar_select 0, %s6, %s4
  // Predicated region
  $region2: #{linear_probe_forward.1} parent=0 // pred_check
    _
  $region3: #{linear_probe_forward.1} parent=0 // pred_check_branch
    %9 = sbr.rel (0) target = $region5
  $region4: #{linear_probe_forward.1} parent=0 // pred_region
    _
  $region5: #{linear_probe_forward.1} parent=0 // pred_fallthru
    _
  // Predicated region
  $region6: #{linear_probe_forward.1} parent=0 // pred_check
    _
  $region7: #{linear_probe_forward.1} parent=0 // pred_check_branch
    %11 = sbr.rel (0) target = $region9
  $region8: #{linear_probe_forward.1} parent=0 // pred_region
    _
  $region9: #{linear_probe_forward.1} parent=0 // pred_fallthru
    _
  // Predicated region
  $region10: #{linear_probe_forward.1} parent=0 // pred_check
    _
  $region11: #{linear_probe_forward.1} parent=0 // pred_check_branch
    %13 = sbr.rel (0) target = $region13
  $region12: #{linear_probe_forward.1} parent=0 // pred_region
    _
  $region13: #{linear_probe_forward.1} parent=0 // pred_fallthru
    _
  %v15 = vld [vmem:[%s0] sm:$0xf]
  %v16 = vld [vmem:[%s0 + $0x4] sm:$0xf]
  %v17 = vld [vmem:[%s1] sm:$0xf]
  %v18 = vld [vmem:[%s1 + $0x4] sm:$0xf]
  %v19 = vld [vmem:[%s1 + $0x8] sm:$0xf]
  %v20 = vld [vmem:[%s1 + $0xc] sm:$0xf]
  %v21 = vld [vmem:[%s1 + $0x10] sm:$0xf]
  %v22 = vld [vmem:[%s1 + $0x14] sm:$0xf]
  %v23 = vld [vmem:[%s1 + $0x18] sm:$0xf]
  %v24 = vld [vmem:[%s1 + $0x1c] sm:$0xf]
  %v25 = vld [vmem:[%s1 + $0x20] sm:$0xf]
  %v26 = vld [vmem:[%s1 + $0x24] sm:$0xf]
  %v27 = vld [vmem:[%s1 + $0x28] sm:$0xf]
  %v28 = vld [vmem:[%s1 + $0x2c] sm:$0xf]
  %v29 = vld [vmem:[%s1 + $0x30] sm:$0xf]
  %v30 = vld [vmem:[%s1 + $0x34] sm:$0xf]
  %v31 = vld [vmem:[%s1 + $0x38] sm:$0xf]
  %v32 = vld [vmem:[%s1 + $0x3c] sm:$0xf]
  %v33 = vld [vmem:[%s2] sm:$0x1]
  %v35 = vlaneseq
  %v36 = vshrl.u32 %v35, 7
  %v37 = vsub.s32 0, %v36
  %v38 = vrot.slane %v33, %v37
  %v42 = vunpack.c.l.b16 %v15
  %v43 = vunpack.c.l.b16 %v16
  %v44 = vpack.c.b16 %v43, %v42
  %v62 = vunpack.c.l.b16 %v17
  %v63 = vunpack.c.l.b16 %v18
  %v64 = vunpack.c.l.b16 %v19
  %v65 = vunpack.c.l.b16 %v20
  %v66 = vunpack.c.l.b16 %v21
  %v67 = vunpack.c.l.b16 %v22
  %v68 = vunpack.c.l.b16 %v23
  %v69 = vunpack.c.l.b16 %v24
  %v70 = vunpack.c.l.b16 %v25
  %v71 = vunpack.c.l.b16 %v26
  %v72 = vunpack.c.l.b16 %v27
  %v73 = vunpack.c.l.b16 %v28
  %v74 = vunpack.c.l.b16 %v29
  %v75 = vunpack.c.l.b16 %v30
  %v76 = vunpack.c.l.b16 %v31
  %v77 = vunpack.c.l.b16 %v32
  %v78 = vpack.c.b16 %v63, %v62
  %v79 = vpack.c.b16 %v65, %v64
  %v80 = vpack.c.b16 %v67, %v66
  %v81 = vpack.c.b16 %v69, %v68
  %v82 = vpack.c.b16 %v71, %v70
  %v83 = vpack.c.b16 %v73, %v72
  %v84 = vpack.c.b16 %v75, %v74
  %v85 = vpack.c.b16 %v77, %v76
  %94 = vmatprep.subr.bf16.mxu0 0
  %95 = vmatpush1.bf16.msra.mxu0 %v78
  %96 = vmatprep.subr.bf16.mxu0 0
  %97 = vmatpush1.bf16.msra.mxu0 %v79
  %98 = vmatprep.subr.bf16.mxu0 0
  %99 = vmatpush1.bf16.msra.mxu0 %v80
  %100 = vmatprep.subr.bf16.mxu0 0
  %101 = vmatpush1.bf16.msra.mxu0 %v81
  %102 = vmatprep.subr.bf16.mxu0 0
  %103 = vmatpush1.bf16.msra.mxu0 %v82
  %104 = vmatprep.subr.bf16.mxu0 0
  %105 = vmatpush1.bf16.msra.mxu0 %v83
  %106 = vmatprep.subr.bf16.mxu0 0
  %107 = vmatpush1.bf16.msra.mxu0 %v84
  %108 = vmatprep.subr.bf16.mxu0 0
  %109 = vmatpush1.bf16.msra.mxu0 %v85
  %110 = vmatprep.subr.bf16.mxu0 0
  %111 = vmatpush1.bf16.msra.mxu0 0
  %112 = vmatprep.subr.bf16.mxu0 0
  %113 = vmatpush1.bf16.msra.mxu0 0
  %114 = vmatprep.subr.bf16.mxu0 0
  %115 = vmatpush1.bf16.msra.mxu0 0
  %116 = vmatprep.subr.bf16.mxu0 0
  %117 = vmatpush1.bf16.msra.mxu0 0
  %118 = vmatprep.subr.bf16.mxu0 0
  %119 = vmatpush1.bf16.msra.mxu0 0
  %120 = vmatprep.subr.bf16.mxu0 0
  %121 = vmatpush1.bf16.msra.mxu0 0
  %122 = vmatprep.subr.bf16.mxu0 0
  %123 = vmatpush1.bf16.msra.mxu0 0
  %124 = vmatprep.subr.bf16.mxu0 0
  %125 = vmatpush1.bf16.msra.mxu0 0
  %126 = vmatprep.mubr.bf16.mxu0 0
  %127 = vmatmul.mubr.bf16.gmra.mrb[0].mxu0 %v44
  %v128 = vpop.f32.mrb[0].mxu0
  %v129 = vadd.f32 %v38, %v128
  %v130 = vpop.f32.mrb[0].mxu0
  %v131 = vpop.f32.mrb[0].mxu0
  %v132 = vadd.f32 %v38, %v131
  %v133 = vpop.f32.mrb[0].mxu0
  %134 = vdwg.mxu0
  %135 = vst [vmem:[%s3] sm:$0xff] %v129
  %136 = vst [vmem:[%s3 + $0x8] sm:$0xff] %v132
  // Predicated region
  $region14: #{linear_probe_forward.1} parent=0 // pred_check
    _
  $region15: #{linear_probe_forward.1} parent=0 // pred_check_branch
    %138 = sbr.rel (0) target = $region17
  $region16: #{linear_probe_forward.1} parent=0 // pred_region
    _
  $region17: #{linear_probe_forward.1} parent=0 // pred_fallthru
    _
  // Predicated region
  $region18: #{linear_probe_forward.1} parent=0 // pred_check
    _
  $region19: #{linear_probe_forward.1} parent=0 // pred_check_branch
    %140 = sbr.rel (0) target = $region21
  $region20: #{linear_probe_forward.1} parent=0 // pred_region
    _
  $region21: #{linear_probe_forward.1} parent=0 // pred_fallthru
    _

</llo_original>
